<compile_context>
chip_gen: v6e
topology: v6e:2x2x1
jax: 0.10.0
libtpu: 0.0.40
codegen_flags: <defaults>
</compile_context>

<pallas_src>
import functools

import jax
import jax.numpy as jnp
from jax.experimental import pallas as pl
from jax.experimental.pallas import tpu as pltpu


def _round_up(v, m):
    return -(-v // m) * m


def _dice_kernel(x_ref, t_ref, inter_ref, union_ref, *, num_classes, masked):
    """One (image n, pixel-tile j) grid step.

    x_ref:     (1, C, TR, 128) logits tile (class-major, lane dense)
    t_ref:     (1, 1, TR, 128) int32 labels (-1 marks padded pixels)
    inter_ref: (1, C, TR, 128) resident accumulator: sum(probs * onehot)
    union_ref: (1, C, TR, 128) resident accumulator: sum(probs + onehot)
    """
    j = pl.program_id(1)

    @pl.when(j == 0)
    def _():
        inter_ref[...] = jnp.zeros_like(inter_ref)
        union_ref[...] = jnp.zeros_like(union_ref)

    t = t_ref[0, 0]                                        # (TR, 128) int32

    # Numerically stable softmax over the class axis, unrolled over the C
    # slabs so everything stays full-width elementwise VPU/EUP work.
    m = x_ref[0, 0].astype(jnp.float32)
    for c in range(1, num_classes):
        m = jnp.maximum(m, x_ref[0, c].astype(jnp.float32))

    exps = []
    s = None
    for c in range(num_classes):
        e_c = jnp.exp(x_ref[0, c].astype(jnp.float32) - m)  # EUP
        exps.append(e_c)
        s = e_c if s is None else s + e_c

    inv = pl.reciprocal(s, approx=True)                    # EUP vrcp
    inv = inv * (2.0 - s * inv)                            # 1 Newton step -> ~f32 exact
    if masked:
        # Padded pixels carry label -1: zero their probability mass so they
        # contribute nothing to either accumulator.
        inv = inv * (t >= 0).astype(jnp.float32)

    for c in range(num_classes):
        p_c = exps[c] * inv                                # probs of class c
        oh_c = (t == c).astype(jnp.float32)                # one-hot row, in-register
        inter_ref[0, c] += p_c * oh_c
        union_ref[0, c] += p_c + oh_c


def dice_loss(logits, targets, *, smooth=1e-5, tile_pixels=4096):
    """logits: (N, C, H, W) float; targets: (N, 1, H, W) or (N, H, W) int labels."""
    N, C, H, W = logits.shape
    HW = H * W

    # --- choose a lane-aligned pixel tile (sweepable: bigger amortizes the
    #     ~0.35us/grid-step overhead, smaller eases register pressure).
    hw128 = _round_up(HW, 128)
    tile_hw = int(tile_pixels)
    if tile_hw >= hw128:
        tile_hw = hw128                                    # whole image in one tile
    else:
        tile_hw = max(1024, (tile_hw // 1024) * 1024)      # keep tile rows % 8 == 0
        tile_hw = min(tile_hw, hw128)
    hw_pad = _round_up(HW, tile_hw)
    tile_r = tile_hw // 128
    rows = hw_pad // 128
    num_tiles = hw_pad // tile_hw
    masked = hw_pad != HW

    # --- glue: free reshape of native NCHW (NO transpose, no dtype copy; the
    #     kernel upcasts in-register, so bf16 logits also stream as bf16).
    x = logits.reshape(N, C, HW)
    t = targets.reshape(N, 1, HW).astype(jnp.int32)
    if masked:
        x = jnp.pad(x, ((0, 0), (0, 0), (0, hw_pad - HW)))
        t = jnp.pad(t, ((0, 0), (0, 0), (0, hw_pad - HW)), constant_values=-1)
    x = x.reshape(N, C, rows, 128)
    t = t.reshape(N, 1, rows, 128)

    kernel = functools.partial(_dice_kernel, num_classes=C, masked=masked)

    inter_part, union_part = pl.pallas_call(
        kernel,
        out_shape=(
            jax.ShapeDtypeStruct((N, C, tile_r, 128), jnp.float32),
            jax.ShapeDtypeStruct((N, C, tile_r, 128), jnp.float32),
        ),
        grid_spec=pltpu.PrefetchScalarGridSpec(
            num_scalar_prefetch=0,
            grid=(N, num_tiles),
            in_specs=[
                pl.BlockSpec((1, C, tile_r, 128), lambda n, j: (n, 0, j, 0)),
                pl.BlockSpec((1, 1, tile_r, 128), lambda n, j: (n, 0, j, 0)),
            ],
            out_specs=(
                pl.BlockSpec((1, C, tile_r, 128), lambda n, j: (n, 0, 0, 0)),
                pl.BlockSpec((1, C, tile_r, 128), lambda n, j: (n, 0, 0, 0)),
            ),
        ),
        compiler_params=pltpu.CompilerParams(
            dimension_semantics=("parallel", "arbitrary")),
    )(x, t)

    # Tiny finalize in plain JAX: one cross-lane/batch reduction + dice.
    inter = jnp.sum(inter_part, axis=(0, 2, 3))            # (C,)
    union = jnp.sum(union_part, axis=(0, 2, 3))            # (C,)
    dice = (2.0 * inter + smooth) / (union + smooth)
    return 1.0 - jnp.mean(dice)


def _reference(logits, targets, smooth=1e-5):
    """Pure-JAX reference mirroring the PyTorch DiceLoss module."""
    N, C, H, W = logits.shape
    probs = jax.nn.softmax(logits.astype(jnp.float32), axis=1)
    tgt = targets.reshape(N, H, W)
    onehot = jax.nn.one_hot(tgt, C, dtype=jnp.float32).transpose(0, 3, 1, 2)
    dims = (0, 2, 3)
    inter = jnp.sum(probs * onehot, dims)
    union = jnp.sum(probs + onehot, dims)
    dice = (2.0 * inter + smooth) / (union + smooth)
    return 1.0 - jnp.mean(dice)


if __name__ == "__main__":
    key = jax.random.PRNGKey(0)
    k1, k2 = jax.random.split(key)

    N, C, H, W = 2, 4, 16, 16
    logits = jax.random.normal(k1, (N, C, H, W), dtype=jnp.float32)
    targets = jax.random.randint(k2, (N, 1, H, W), 0, C, dtype=jnp.int32)

    loss = dice_loss(logits, targets)
    loss = jax.block_until_ready(loss)

    ref = _reference(logits, targets)
    assert jnp.allclose(loss, ref, atol=1e-4, rtol=1e-4), (loss, ref)

    print("KERNEL_OK")
</pallas_src>

<mosaic_0001>
module attributes {stable_mosaic.version = 11 : i64} {
  func.func @_dice_kernel(%arg0: i32, %arg1: i32, %arg2: memref<1x4x2x128xf32, #tpu.memory_space<vmem>>, %arg3: memref<1x1x2x128xi32, #tpu.memory_space<vmem>>, %arg4: memref<1x4x2x128xf32, #tpu.memory_space<vmem>>, %arg5: memref<1x4x2x128xf32, #tpu.memory_space<vmem>>) attributes {dimension_semantics = [#tpu.dimension_semantics<parallel>, #tpu.dimension_semantics<arbitrary>], iteration_bounds = array<i64: 2, 1>, scalar_prefetch = 0 : i64, scratch_operands = 0 : i64, tpu.core_type = #tpu.core_type<tc>, window_params = [{transform_indices = @transform_0, window_bounds = array<i64: 1, 4, 2, 128>}, {transform_indices = @transform_1, window_bounds = array<i64: 1, 1, 2, 128>}, {transform_indices = @transform_2, window_bounds = array<i64: 1, 4, 2, 128>}, {transform_indices = @transform_3, window_bounds = array<i64: 1, 4, 2, 128>}]} {
    %c0_i32 = arith.constant 0 : i32
    %0 = arith.cmpi eq, %arg1, %c0_i32 : i32
    %1 = arith.extui %0 : i1 to i32
    %c0_i32_0 = arith.constant 0 : i32
    %2 = arith.cmpi ne, %1, %c0_i32_0 : i32
    scf.if %2 {
      %cst_98 = arith.constant 0.000000e+00 : f32
      %116 = vector.broadcast %cst_98 : f32 to vector<1x4x2x128xf32>
      %c0_99 = arith.constant 0 : index
      %c0_100 = arith.constant 0 : index
      %c0_101 = arith.constant 0 : index
      %c0_102 = arith.constant 0 : index
      %117 = vector.load %arg4[%c0_99, %c0_100, %c0_101, %c0_102] : memref<1x4x2x128xf32, #tpu.memory_space<vmem>>, vector<1x4x2x128xf32>
      tpu.vector_store %arg4[%c0_99, %c0_100, %c0_101, %c0_102], %116 {strides = array<i32>} : memref<1x4x2x128xf32, #tpu.memory_space<vmem>>, vector<1x4x2x128xf32>,
      %cst_103 = arith.constant 0.000000e+00 : f32
      %118 = vector.broadcast %cst_103 : f32 to vector<1x4x2x128xf32>
      %c0_104 = arith.constant 0 : index
      %c0_105 = arith.constant 0 : index
      %c0_106 = arith.constant 0 : index
      %c0_107 = arith.constant 0 : index
      %119 = vector.load %arg5[%c0_104, %c0_105, %c0_106, %c0_107] : memref<1x4x2x128xf32, #tpu.memory_space<vmem>>, vector<1x4x2x128xf32>
      tpu.vector_store %arg5[%c0_104, %c0_105, %c0_106, %c0_107], %118 {strides = array<i32>} : memref<1x4x2x128xf32, #tpu.memory_space<vmem>>, vector<1x4x2x128xf32>,
    } else {
    }
    %c0 = arith.constant 0 : index
    %c0_1 = arith.constant 0 : index
    %c0_2 = arith.constant 0 : index
    %c0_3 = arith.constant 0 : index
    %3 = vector.load %arg3[%c0, %c0_1, %c0_2, %c0_3] : memref<1x1x2x128xi32, #tpu.memory_space<vmem>>, vector<1x1x2x128xi32>
    %4 = vector.shape_cast %3 : vector<1x1x2x128xi32> to vector<2x128xi32>
    %c0_4 = arith.constant 0 : index
    %c0_5 = arith.constant 0 : index
    %c0_6 = arith.constant 0 : index
    %c0_7 = arith.constant 0 : index
    %5 = vector.load %arg2[%c0_4, %c0_5, %c0_6, %c0_7] : memref<1x4x2x128xf32, #tpu.memory_space<vmem>>, vector<1x1x2x128xf32>
    %6 = vector.shape_cast %5 : vector<1x1x2x128xf32> to vector<2x128xf32>
    %c0_8 = arith.constant 0 : index
    %c1 = arith.constant 1 : index
    %c0_9 = arith.constant 0 : index
    %c0_10 = arith.constant 0 : index
    %7 = vector.load %arg2[%c0_8, %c1, %c0_9, %c0_10] : memref<1x4x2x128xf32, #tpu.memory_space<vmem>>, vector<1x1x2x128xf32>
    %8 = vector.shape_cast %7 : vector<1x1x2x128xf32> to vector<2x128xf32>
    %9 = arith.maximumf %6, %8 : vector<2x128xf32>
    %c0_11 = arith.constant 0 : index
    %c2 = arith.constant 2 : index
    %c0_12 = arith.constant 0 : index
    %c0_13 = arith.constant 0 : index
    %10 = vector.load %arg2[%c0_11, %c2, %c0_12, %c0_13] : memref<1x4x2x128xf32, #tpu.memory_space<vmem>>, vector<1x1x2x128xf32>
    %11 = vector.shape_cast %10 : vector<1x1x2x128xf32> to vector<2x128xf32>
    %12 = arith.maximumf %9, %11 : vector<2x128xf32>
    %c0_14 = arith.constant 0 : index
    %c3 = arith.constant 3 : index
    %c0_15 = arith.constant 0 : index
    %c0_16 = arith.constant 0 : index
    %13 = vector.load %arg2[%c0_14, %c3, %c0_15, %c0_16] : memref<1x4x2x128xf32, #tpu.memory_space<vmem>>, vector<1x1x2x128xf32>
    %14 = vector.shape_cast %13 : vector<1x1x2x128xf32> to vector<2x128xf32>
    %15 = arith.maximumf %12, %14 : vector<2x128xf32>
    %c0_17 = arith.constant 0 : index
    %c0_18 = arith.constant 0 : index
    %c0_19 = arith.constant 0 : index
    %c0_20 = arith.constant 0 : index
    %16 = vector.load %arg2[%c0_17, %c0_18, %c0_19, %c0_20] : memref<1x4x2x128xf32, #tpu.memory_space<vmem>>, vector<1x1x2x128xf32>
    %17 = vector.shape_cast %16 : vector<1x1x2x128xf32> to vector<2x128xf32>
    %18 = arith.subf %17, %15 : vector<2x128xf32>
    %19 = math.exp %18 : vector<2x128xf32>
    %c0_21 = arith.constant 0 : index
    %c1_22 = arith.constant 1 : index
    %c0_23 = arith.constant 0 : index
    %c0_24 = arith.constant 0 : index
    %20 = vector.load %arg2[%c0_21, %c1_22, %c0_23, %c0_24] : memref<1x4x2x128xf32, #tpu.memory_space<vmem>>, vector<1x1x2x128xf32>
    %21 = vector.shape_cast %20 : vector<1x1x2x128xf32> to vector<2x128xf32>
    %22 = arith.subf %21, %15 : vector<2x128xf32>
    %23 = math.exp %22 : vector<2x128xf32>
    %24 = arith.addf %19, %23 : vector<2x128xf32>
    %c0_25 = arith.constant 0 : index
    %c2_26 = arith.constant 2 : index
    %c0_27 = arith.constant 0 : index
    %c0_28 = arith.constant 0 : index
    %25 = vector.load %arg2[%c0_25, %c2_26, %c0_27, %c0_28] : memref<1x4x2x128xf32, #tpu.memory_space<vmem>>, vector<1x1x2x128xf32>
    %26 = vector.shape_cast %25 : vector<1x1x2x128xf32> to vector<2x128xf32>
    %27 = arith.subf %26, %15 : vector<2x128xf32>
    %28 = math.exp %27 : vector<2x128xf32>
    %29 = arith.addf %24, %28 : vector<2x128xf32>
    %c0_29 = arith.constant 0 : index
    %c3_30 = arith.constant 3 : index
    %c0_31 = arith.constant 0 : index
    %c0_32 = arith.constant 0 : index
    %30 = vector.load %arg2[%c0_29, %c3_30, %c0_31, %c0_32] : memref<1x4x2x128xf32, #tpu.memory_space<vmem>>, vector<1x1x2x128xf32>
    %31 = vector.shape_cast %30 : vector<1x1x2x128xf32> to vector<2x128xf32>
    %32 = arith.subf %31, %15 : vector<2x128xf32>
    %33 = math.exp %32 : vector<2x128xf32>
    %34 = arith.addf %29, %33 : vector<2x128xf32>
    %35 = tpu.reciprocal %34 {approx = true} : vector<2x128xf32> -> vector<2x128xf32>
    %36 = arith.mulf %34, %35 : vector<2x128xf32>
    %cst = arith.constant 2.000000e+00 : f32
    %37 = vector.broadcast %cst : f32 to vector<2x128xf32>
    %38 = arith.subf %37, %36 : vector<2x128xf32>
    %39 = arith.mulf %35, %38 : vector<2x128xf32>
    %40 = arith.mulf %19, %39 : vector<2x128xf32>
    %c0_i32_33 = arith.constant 0 : i32
    %41 = vector.broadcast %c0_i32_33 : i32 to vector<2x128xi32>
    %42 = arith.cmpi eq, %4, %41 : vector<2x128xi32>
    %43 = arith.extui %42 : vector<2x128xi1> to vector<2x128xi32>
    %44 = arith.sitofp %43 : vector<2x128xi32> to vector<2x128xf32>
    %c0_34 = arith.constant 0 : index
    %c0_35 = arith.constant 0 : index
    %c0_36 = arith.constant 0 : index
    %c0_37 = arith.constant 0 : index
    %45 = vector.load %arg4[%c0_34, %c0_35, %c0_36, %c0_37] : memref<1x4x2x128xf32, #tpu.memory_space<vmem>>, vector<1x1x2x128xf32>
    %46 = vector.shape_cast %45 : vector<1x1x2x128xf32> to vector<2x128xf32>
    %47 = arith.mulf %40, %44 : vector<2x128xf32>
    %48 = arith.addf %46, %47 : vector<2x128xf32>
    %c0_38 = arith.constant 0 : index
    %c0_39 = arith.constant 0 : index
    %c0_40 = arith.constant 0 : index
    %c0_41 = arith.constant 0 : index
    %49 = vector.load %arg4[%c0_38, %c0_39, %c0_40, %c0_41] : memref<1x4x2x128xf32, #tpu.memory_space<vmem>>, vector<1x1x2x128xf32>
    %50 = vector.shape_cast %49 : vector<1x1x2x128xf32> to vector<2x128xf32>
    %51 = vector.shape_cast %48 : vector<2x128xf32> to vector<1x1x2x128xf32>
    tpu.vector_store %arg4[%c0_38, %c0_39, %c0_40, %c0_41], %51 {strides = array<i32>} : memref<1x4x2x128xf32, #tpu.memory_space<vmem>>, vector<1x1x2x128xf32>,
    %c0_42 = arith.constant 0 : index
    %c0_43 = arith.constant 0 : index
    %c0_44 = arith.constant 0 : index
    %c0_45 = arith.constant 0 : index
    %52 = vector.load %arg5[%c0_42, %c0_43, %c0_44, %c0_45] : memref<1x4x2x128xf32, #tpu.memory_space<vmem>>, vector<1x1x2x128xf32>
    %53 = vector.shape_cast %52 : vector<1x1x2x128xf32> to vector<2x128xf32>
    %54 = arith.addf %40, %44 : vector<2x128xf32>
    %55 = arith.addf %53, %54 : vector<2x128xf32>
    %c0_46 = arith.constant 0 : index
    %c0_47 = arith.constant 0 : index
    %c0_48 = arith.constant 0 : index
    %c0_49 = arith.constant 0 : index
    %56 = vector.load %arg5[%c0_46, %c0_47, %c0_48, %c0_49] : memref<1x4x2x128xf32, #tpu.memory_space<vmem>>, vector<1x1x2x128xf32>
    %57 = vector.shape_cast %56 : vector<1x1x2x128xf32> to vector<2x128xf32>
    %58 = vector.shape_cast %55 : vector<2x128xf32> to vector<1x1x2x128xf32>
    tpu.vector_store %arg5[%c0_46, %c0_47, %c0_48, %c0_49], %58 {strides = array<i32>} : memref<1x4x2x128xf32, #tpu.memory_space<vmem>>, vector<1x1x2x128xf32>,
    %59 = arith.mulf %23, %39 : vector<2x128xf32>
    %c1_i32 = arith.constant 1 : i32
    %60 = vector.broadcast %c1_i32 : i32 to vector<2x128xi32>
    %61 = arith.cmpi eq, %4, %60 : vector<2x128xi32>
    %62 = arith.extui %61 : vector<2x128xi1> to vector<2x128xi32>
    %63 = arith.sitofp %62 : vector<2x128xi32> to vector<2x128xf32>
    %c0_50 = arith.constant 0 : index
    %c1_51 = arith.constant 1 : index
    %c0_52 = arith.constant 0 : index
    %c0_53 = arith.constant 0 : index
    %64 = vector.load %arg4[%c0_50, %c1_51, %c0_52, %c0_53] : memref<1x4x2x128xf32, #tpu.memory_space<vmem>>, vector<1x1x2x128xf32>
    %65 = vector.shape_cast %64 : vector<1x1x2x128xf32> to vector<2x128xf32>
    %66 = arith.mulf %59, %63 : vector<2x128xf32>
    %67 = arith.addf %65, %66 : vector<2x128xf32>
    %c0_54 = arith.constant 0 : index
    %c1_55 = arith.constant 1 : index
    %c0_56 = arith.constant 0 : index
    %c0_57 = arith.constant 0 : index
    %68 = vector.load %arg4[%c0_54, %c1_55, %c0_56, %c0_57] : memref<1x4x2x128xf32, #tpu.memory_space<vmem>>, vector<1x1x2x128xf32>
    %69 = vector.shape_cast %68 : vector<1x1x2x128xf32> to vector<2x128xf32>
    %70 = vector.shape_cast %67 : vector<2x128xf32> to vector<1x1x2x128xf32>
    tpu.vector_store %arg4[%c0_54, %c1_55, %c0_56, %c0_57], %70 {strides = array<i32>} : memref<1x4x2x128xf32, #tpu.memory_space<vmem>>, vector<1x1x2x128xf32>,
    %c0_58 = arith.constant 0 : index
    %c1_59 = arith.constant 1 : index
    %c0_60 = arith.constant 0 : index
    %c0_61 = arith.constant 0 : index
    %71 = vector.load %arg5[%c0_58, %c1_59, %c0_60, %c0_61] : memref<1x4x2x128xf32, #tpu.memory_space<vmem>>, vector<1x1x2x128xf32>
    %72 = vector.shape_cast %71 : vector<1x1x2x128xf32> to vector<2x128xf32>
    %73 = arith.addf %59, %63 : vector<2x128xf32>
    %74 = arith.addf %72, %73 : vector<2x128xf32>
    %c0_62 = arith.constant 0 : index
    %c1_63 = arith.constant 1 : index
    %c0_64 = arith.constant 0 : index
    %c0_65 = arith.constant 0 : index
    %75 = vector.load %arg5[%c0_62, %c1_63, %c0_64, %c0_65] : memref<1x4x2x128xf32, #tpu.memory_space<vmem>>, vector<1x1x2x128xf32>
    %76 = vector.shape_cast %75 : vector<1x1x2x128xf32> to vector<2x128xf32>
    %77 = vector.shape_cast %74 : vector<2x128xf32> to vector<1x1x2x128xf32>
    tpu.vector_store %arg5[%c0_62, %c1_63, %c0_64, %c0_65], %77 {strides = array<i32>} : memref<1x4x2x128xf32, #tpu.memory_space<vmem>>, vector<1x1x2x128xf32>,
    %78 = arith.mulf %28, %39 : vector<2x128xf32>
    %c2_i32 = arith.constant 2 : i32
    %79 = vector.broadcast %c2_i32 : i32 to vector<2x128xi32>
    %80 = arith.cmpi eq, %4, %79 : vector<2x128xi32>
    %81 = arith.extui %80 : vector<2x128xi1> to vector<2x128xi32>
    %82 = arith.sitofp %81 : vector<2x128xi32> to vector<2x128xf32>
    %c0_66 = arith.constant 0 : index
    %c2_67 = arith.constant 2 : index
    %c0_68 = arith.constant 0 : index
    %c0_69 = arith.constant 0 : index
    %83 = vector.load %arg4[%c0_66, %c2_67, %c0_68, %c0_69] : memref<1x4x2x128xf32, #tpu.memory_space<vmem>>, vector<1x1x2x128xf32>
    %84 = vector.shape_cast %83 : vector<1x1x2x128xf32> to vector<2x128xf32>
    %85 = arith.mulf %78, %82 : vector<2x128xf32>
    %86 = arith.addf %84, %85 : vector<2x128xf32>
    %c0_70 = arith.constant 0 : index
    %c2_71 = arith.constant 2 : index
    %c0_72 = arith.constant 0 : index
    %c0_73 = arith.constant 0 : index
    %87 = vector.load %arg4[%c0_70, %c2_71, %c0_72, %c0_73] : memref<1x4x2x128xf32, #tpu.memory_space<vmem>>, vector<1x1x2x128xf32>
    %88 = vector.shape_cast %87 : vector<1x1x2x128xf32> to vector<2x128xf32>
    %89 = vector.shape_cast %86 : vector<2x128xf32> to vector<1x1x2x128xf32>
    tpu.vector_store %arg4[%c0_70, %c2_71, %c0_72, %c0_73], %89 {strides = array<i32>} : memref<1x4x2x128xf32, #tpu.memory_space<vmem>>, vector<1x1x2x128xf32>,
    %c0_74 = arith.constant 0 : index
    %c2_75 = arith.constant 2 : index
    %c0_76 = arith.constant 0 : index
    %c0_77 = arith.constant 0 : index
    %90 = vector.load %arg5[%c0_74, %c2_75, %c0_76, %c0_77] : memref<1x4x2x128xf32, #tpu.memory_space<vmem>>, vector<1x1x2x128xf32>
    %91 = vector.shape_cast %90 : vector<1x1x2x128xf32> to vector<2x128xf32>
    %92 = arith.addf %78, %82 : vector<2x128xf32>
    %93 = arith.addf %91, %92 : vector<2x128xf32>
    %c0_78 = arith.constant 0 : index
    %c2_79 = arith.constant 2 : index
    %c0_80 = arith.constant 0 : index
    %c0_81 = arith.constant 0 : index
    %94 = vector.load %arg5[%c0_78, %c2_79, %c0_80, %c0_81] : memref<1x4x2x128xf32, #tpu.memory_space<vmem>>, vector<1x1x2x128xf32>
    %95 = vector.shape_cast %94 : vector<1x1x2x128xf32> to vector<2x128xf32>
    %96 = vector.shape_cast %93 : vector<2x128xf32> to vector<1x1x2x128xf32>
    tpu.vector_store %arg5[%c0_78, %c2_79, %c0_80, %c0_81], %96 {strides = array<i32>} : memref<1x4x2x128xf32, #tpu.memory_space<vmem>>, vector<1x1x2x128xf32>,
    %97 = arith.mulf %33, %39 : vector<2x128xf32>
    %c3_i32 = arith.constant 3 : i32
    %98 = vector.broadcast %c3_i32 : i32 to vector<2x128xi32>
    %99 = arith.cmpi eq, %4, %98 : vector<2x128xi32>
    %100 = arith.extui %99 : vector<2x128xi1> to vector<2x128xi32>
    %101 = arith.sitofp %100 : vector<2x128xi32> to vector<2x128xf32>
    %c0_82 = arith.constant 0 : index
    %c3_83 = arith.constant 3 : index
    %c0_84 = arith.constant 0 : index
    %c0_85 = arith.constant 0 : index
    %102 = vector.load %arg4[%c0_82, %c3_83, %c0_84, %c0_85] : memref<1x4x2x128xf32, #tpu.memory_space<vmem>>, vector<1x1x2x128xf32>
    %103 = vector.shape_cast %102 : vector<1x1x2x128xf32> to vector<2x128xf32>
    %104 = arith.mulf %97, %101 : vector<2x128xf32>
    %105 = arith.addf %103, %104 : vector<2x128xf32>
    %c0_86 = arith.constant 0 : index
    %c3_87 = arith.constant 3 : index
    %c0_88 = arith.constant 0 : index
    %c0_89 = arith.constant 0 : index
    %106 = vector.load %arg4[%c0_86, %c3_87, %c0_88, %c0_89] : memref<1x4x2x128xf32, #tpu.memory_space<vmem>>, vector<1x1x2x128xf32>
    %107 = vector.shape_cast %106 : vector<1x1x2x128xf32> to vector<2x128xf32>
    %108 = vector.shape_cast %105 : vector<2x128xf32> to vector<1x1x2x128xf32>
    tpu.vector_store %arg4[%c0_86, %c3_87, %c0_88, %c0_89], %108 {strides = array<i32>} : memref<1x4x2x128xf32, #tpu.memory_space<vmem>>, vector<1x1x2x128xf32>,
    %c0_90 = arith.constant 0 : index
    %c3_91 = arith.constant 3 : index
    %c0_92 = arith.constant 0 : index
    %c0_93 = arith.constant 0 : index
    %109 = vector.load %arg5[%c0_90, %c3_91, %c0_92, %c0_93] : memref<1x4x2x128xf32, #tpu.memory_space<vmem>>, vector<1x1x2x128xf32>
    %110 = vector.shape_cast %109 : vector<1x1x2x128xf32> to vector<2x128xf32>
    %111 = arith.addf %97, %101 : vector<2x128xf32>
    %112 = arith.addf %110, %111 : vector<2x128xf32>
    %c0_94 = arith.constant 0 : index
    %c3_95 = arith.constant 3 : index
    %c0_96 = arith.constant 0 : index
    %c0_97 = arith.constant 0 : index
    %113 = vector.load %arg5[%c0_94, %c3_95, %c0_96, %c0_97] : memref<1x4x2x128xf32, #tpu.memory_space<vmem>>, vector<1x1x2x128xf32>
    %114 = vector.shape_cast %113 : vector<1x1x2x128xf32> to vector<2x128xf32>
    %115 = vector.shape_cast %112 : vector<2x128xf32> to vector<1x1x2x128xf32>
    tpu.vector_store %arg5[%c0_94, %c3_95, %c0_96, %c0_97], %115 {strides = array<i32>} : memref<1x4x2x128xf32, #tpu.memory_space<vmem>>, vector<1x1x2x128xf32>,
    return
  }
  func.func @transform_0(%arg0: i32, %arg1: i32) -> (i32, i32, i32, i32) {
    %c0_i32 = arith.constant 0 : i32
    %c0_i32_0 = arith.constant 0 : i32
    %c0_i32_1 = arith.constant 0 : i32
    return %arg0, %c0_i32, %arg1, %c0_i32_0 : i32, i32, i32, i32
  }
  func.func @transform_1(%arg0: i32, %arg1: i32) -> (i32, i32, i32, i32) {
    %c0_i32 = arith.constant 0 : i32
    %c0_i32_0 = arith.constant 0 : i32
    %c0_i32_1 = arith.constant 0 : i32
    return %arg0, %c0_i32, %arg1, %c0_i32_0 : i32, i32, i32, i32
  }
  func.func @transform_2(%arg0: i32, %arg1: i32) -> (i32, i32, i32, i32) {
    %c0_i32 = arith.constant 0 : i32
    %c0_i32_0 = arith.constant 0 : i32
    %c0_i32_1 = arith.constant 0 : i32
    %c0_i32_2 = arith.constant 0 : i32
    return %arg0, %c0_i32, %c0_i32_0, %c0_i32_1 : i32, i32, i32, i32
  }
  func.func @transform_3(%arg0: i32, %arg1: i32) -> (i32, i32, i32, i32) {
    %c0_i32 = arith.constant 0 : i32
    %c0_i32_0 = arith.constant 0 : i32
    %c0_i32_1 = arith.constant 0 : i32
    %c0_i32_2 = arith.constant 0 : i32
    return %arg0, %c0_i32, %c0_i32_0, %c0_i32_1 : i32, i32, i32, i32
  }
}

</mosaic_0001>

<llo_original>
// kernel: tpu_custom_call.1
$region0: #{tpu_custom_call.1}
  #allocation0 [shape = 'u32[]', space=smem, size = 0x4, offset = 0x4, fixed_abs, tag = 'smem constant byte address 0x4 - core index']
  #allocation1 [shape = 'u32[144,128]{1,0:T(1,128)}', space=vmem, size = 0x12000, scoped, tag = 'internal scratch']
  %s0 = inlined_call_operand.hbm [shape: f32[2,4,2,128], index: 0, kind: input, shape index: {}]
  %s1 = inlined_call_operand.hbm [shape: s32[2,1,2,128], index: 1, kind: input, shape index: {}]
  %s2 = inlined_call_operand.hbm [shape: f32[2,4,2,128], index: 2, kind: output, shape index: {0}]
  %s3 = inlined_call_operand.hbm [shape: f32[2,4,2,128], index: 3, kind: output, shape index: {1}]
  %4 = xla_tuple %s2, %s3
  %s5 = sld [smem:[#allocation0]]
  $region61: #{tpu_custom_call.1} parent=0
    _
  %s7 = ssub.s32 1, %s5
  %s8 = scalar_select 0, %s7, %s5
  $region1: #{tpu_custom_call.1} parent=0
    #allocation2 [shape = 'u8[8192]{0}', space=vmem, size = 0x2000, scoped, tag = 'input window, operand 0']
    #allocation3 [shape = 's32[2]{0}', space=sflag, size = 0x8, scoped, tag = 'scoped memory for tpu_custom_call.1']
    #allocation4 [shape = 's32[2]{0}', space=sflag, size = 0x8, scoped, tag = 'scoped memory for tpu_custom_call.1']
    #allocation5 [shape = 'u8[2048]{0}', space=vmem, size = 0x800, scoped, tag = 'input window, operand 1']
    #allocation6 [shape = 's32[2]{0}', space=sflag, size = 0x8, scoped, tag = 'scoped memory for tpu_custom_call.1']
    #allocation7 [shape = 'u8[8192]{0}', space=vmem, size = 0x2000, scoped, tag = 'output window, operand 0']
    #allocation8 [shape = 'u8[8192]{0}', space=vmem, size = 0x2000, scoped, tag = 'output window, operand 1']
    #allocation9 [shape = 's32[2]{0}', space=sflag, size = 0x8, scoped, tag = 'scoped memory for tpu_custom_call.1']
    %9 = vsyncpa [#allocation3], 0
    %s10 = scalar_lea.sflag [#allocation3], 1
    %11 = vsyncpa %s10, 0
    %12 = vsyncpa [#allocation6], 0
    %s13 = scalar_lea.sflag [#allocation6], 1
    %14 = vsyncpa %s13, 0
    %15 = vsyncpa [#allocation4], 0
    %s16 = scalar_lea.sflag [#allocation4], 1
    %17 = vsyncpa %s16, 0
    %18 = vsyncpa [#allocation9], 0
    %s19 = scalar_lea.sflag [#allocation9], 1
    %20 = vsyncpa %s19, 0
    loop: start=0, step=1, limit=4
    $region2: #{tpu_custom_call.1} parent=1 // loop_pre_header
      _
    $region3: #{tpu_custom_call.1} parent=1 // loop_header
      %s22 = sphi 0, %s26
      %p23 = scmp.ge.s32.totalorder %s22, 4
      %s29 = sphi 0, %s41
      %s30 = sphi 0, %s37
      %s31 = sphi 0, %s29
      %s32 = sphi 0, %s30
      %s33 = sphi 0, %s31
      %s34 = sphi 0, %s32
      %s46 = sphi 0, %s48
      %s49 = sphi 0, %s46
      %s50 = sphi 0, %s49
      %s66 = sphi 0, %s50
      %s74 = sphi 0, %s76
      %s77 = sphi 0, %s74
      %s78 = sphi 0, %s77
      %s94 = sphi 0, %s78
      %s100 = sphi 0, %s102
      %s103 = sphi 0, %s100
      %s104 = sphi 0, %s103
      %s120 = sphi 0, %s104
      %s126 = sphi 0, %s128
      %s129 = sphi 0, %s126
      %s130 = sphi 0, %s129
      %s146 = sphi 0, %s130
    $region4: #{tpu_custom_call.1} parent=1 // loop_header_branch
      %25 = sbr.rel (%p23) target = $region8
    $region5: #{tpu_custom_call.1} parent=1 // loop_body
      %s27 = ssub.s32 %s22, 1
      %s28 = ssub.s32 %s22, 2
      %s35 = sadd.s32 1, %s30
      %p36 = scmp.ge.s32.totalorder %s35, 1
      %s37 = scalar_select %p36, 0, %s35
      %s38 = sadd.s32 1, %s29
      %s39 = scalar_select %p36, %s38, %s29
      %p40 = scmp.ge.s32.totalorder %s39, 2
      %s41 = scalar_select %p40, 0, %s39
      %s42 = ssub.s32 %s29, %s41
      %s43 = ssub.s32 %s30, %s37
      %s44 = sor.u32 %s42, %s43
      %p45 = scmp.eq.s32.totalorder %s44, 0
      %s47 = sadd.s32 %s46, 1
      %s48 = scalar_select %p45, %s46, %s47
      %p51 = pneg %p45
      %p52 = scmp.eq.s32.totalorder %s22, 1
      %p53 = por %p51, %p52
      %p54 = scmp.ne.s32.totalorder %s46, %s49
      %p55 = scmp.eq.s32.totalorder %s22, 0
      %p56 = por %p54, %p55
      %p57 = scmp.ne.s32.totalorder %s46, %s49
      %p58 = scmp.eq.s32.totalorder %s27, 1
      %p59 = por %p57, %p58
      %p60 = scmp.ne.s32.totalorder %s49, %s50
      %p61 = scmp.eq.s32.totalorder %s27, 0
      %p62 = por %p60, %p61
      %p63 = scmp.ne.s32.totalorder %s49, %s50
      %p64 = scmp.eq.s32.totalorder %s28, 1
      %p65 = por %p63, %p64
      %p67 = scmp.ne.s32.totalorder %s50, %s66
      %p68 = scmp.eq.s32.totalorder %s28, 0
      %p69 = por %p67, %p68
      %s70 = ssub.s32 %s29, %s41
      %s71 = ssub.s32 %s30, %s37
      %s72 = sor.u32 %s70, %s71
      %p73 = scmp.eq.s32.totalorder %s72, 0
      %s75 = sadd.s32 %s74, 1
      %s76 = scalar_select %p73, %s74, %s75
      %p79 = pneg %p73
      %p80 = scmp.eq.s32.totalorder %s22, 1
      %p81 = por %p79, %p80
      %p82 = scmp.ne.s32.totalorder %s74, %s77
      %p83 = scmp.eq.s32.totalorder %s22, 0
      %p84 = por %p82, %p83
      %p85 = scmp.ne.s32.totalorder %s74, %s77
      %p86 = scmp.eq.s32.totalorder %s27, 1
      %p87 = por %p85, %p86
      %p88 = scmp.ne.s32.totalorder %s77, %s78
      %p89 = scmp.eq.s32.totalorder %s27, 0
      %p90 = por %p88, %p89
      %p91 = scmp.ne.s32.totalorder %s77, %s78
      %p92 = scmp.eq.s32.totalorder %s28, 1
      %p93 = por %p91, %p92
      %p95 = scmp.ne.s32.totalorder %s78, %s94
      %p96 = scmp.eq.s32.totalorder %s28, 0
      %p97 = por %p95, %p96
      %s98 = ssub.s32 %s29, %s41
      %p99 = scmp.eq.s32.totalorder %s98, 0
      %s101 = sadd.s32 %s100, 1
      %s102 = scalar_select %p99, %s100, %s101
      %p105 = pneg %p99
      %p106 = scmp.eq.s32.totalorder %s22, 1
      %p107 = por %p105, %p106
      %p108 = scmp.ne.s32.totalorder %s100, %s103
      %p109 = scmp.eq.s32.totalorder %s22, 0
      %p110 = por %p108, %p109
      %p111 = scmp.ne.s32.totalorder %s100, %s103
      %p112 = scmp.eq.s32.totalorder %s27, 1
      %p113 = por %p111, %p112
      %p114 = scmp.ne.s32.totalorder %s103, %s104
      %p115 = scmp.eq.s32.totalorder %s27, 0
      %p116 = por %p114, %p115
      %p117 = scmp.ne.s32.totalorder %s103, %s104
      %p118 = scmp.eq.s32.totalorder %s28, 1
      %p119 = por %p117, %p118
      %p121 = scmp.ne.s32.totalorder %s104, %s120
      %p122 = scmp.eq.s32.totalorder %s28, 0
      %p123 = por %p121, %p122
      %s124 = ssub.s32 %s29, %s41
      %p125 = scmp.eq.s32.totalorder %s124, 0
      %s127 = sadd.s32 %s126, 1
      %s128 = scalar_select %p125, %s126, %s127
      %p131 = pneg %p125
      %p132 = scmp.eq.s32.totalorder %s22, 1
      %p133 = por %p131, %p132
      %p134 = scmp.ne.s32.totalorder %s126, %s129
      %p135 = scmp.eq.s32.totalorder %s22, 0
      %p136 = por %p134, %p135
      %p137 = scmp.ne.s32.totalorder %s126, %s129
      %p138 = scmp.eq.s32.totalorder %s27, 1
      %p139 = por %p137, %p138
      %p140 = scmp.ne.s32.totalorder %s129, %s130
      %p141 = scmp.eq.s32.totalorder %s27, 0
      %p142 = por %p140, %p141
      %p143 = scmp.ne.s32.totalorder %s129, %s130
      %p144 = scmp.eq.s32.totalorder %s28, 1
      %p145 = por %p143, %p144
      %p147 = scmp.ne.s32.totalorder %s130, %s146
      %p148 = scmp.eq.s32.totalorder %s28, 0
      %p149 = por %p147, %p148
      %p150 = scmp.le.s32.totalorder 1, %s22
      %p151 = scmp.lt.s32.totalorder %s22, 3
      %p152 = pnand %p150, %p151
      %p153 = pneg %p152
      // Predicated region
      $region9: #{tpu_custom_call.1} parent=5 // pred_check
        _
      $region10: #{tpu_custom_call.1} parent=5 // pred_check_branch
        %155 = sbr.rel (%p152) target = $region12
      $region11: #{tpu_custom_call.1} parent=5 // pred_region
        %s156 = ssub.s32 %s22, 1
      $region12: #{tpu_custom_call.1} parent=5 // pred_fallthru
        _
      %p157 = scmp.lt.s32.totalorder %s22, 2
      // Predicated region
      $region13: #{tpu_custom_call.1} parent=5 // pred_check
        %p158 = pneg %p157
      $region14: #{tpu_custom_call.1} parent=5 // pred_check_branch
        %160 = sbr.rel (%p158) target = $region16
      $region15: #{tpu_custom_call.1} parent=5 // pred_region
        // Predicated region
        $region17: #{tpu_custom_call.1} parent=15 // pred_check
          %p161 = pneg %p56
        $region18: #{tpu_custom_call.1} parent=15 // pred_check_branch
          %163 = sbr.rel (%p161) target = $region20
        $region19: #{tpu_custom_call.1} parent=15 // pred_region
          %s164 = sand.u32 %s46, 1
          %s165 = scalar_lea.sflag [#allocation3], %s164
          %s166 = sand.u32 %s46, 1
          %s167 = smul.addr %s166, 8
          %s168 = scalar_lea.vmem [#allocation2], %s167
          %s170 = ssub.s32 128, 128
          %171 = vsyncadd %s165, %s170
          %s172 = smul.addr %s29, 4
          %s173 = sadd.s32 %s30, %s172
          %s174 = smul.addr %s173, 32
          %s175 = scalar_lea.hbm %s0, %s174
          %s176 = sshll.u32 %s168, 4
          %s177 = int_to_ptr.vmem [resolvable:$true] %s176
          %182 = dma.hbm_to_vmem [thread:$0]  %s175, 128, %s177, %s165, 32, 32, 2
        $region20: #{tpu_custom_call.1} parent=15 // pred_fallthru
          _
        // Predicated region
        $region21: #{tpu_custom_call.1} parent=15 // pred_check
          %p183 = pneg %p84
        $region22: #{tpu_custom_call.1} parent=15 // pred_check_branch
          %185 = sbr.rel (%p183) target = $region24
        $region23: #{tpu_custom_call.1} parent=15 // pred_region
          %s186 = sand.u32 %s74, 1
          %s187 = scalar_lea.sflag [#allocation6], %s186
          %s188 = sand.u32 %s74, 1
          %s189 = smul.addr %s188, 2
          %s190 = scalar_lea.vmem [#allocation5], %s189
          %s192 = ssub.s32 32, 32
          %193 = vsyncadd %s187, %s192
          %s194 = sadd.s32 %s30, %s29
          %s195 = smul.addr %s194, 32
          %s196 = scalar_lea.hbm %s1, %s195
          %s198 = sshll.u32 %s190, 4
          %s199 = int_to_ptr.vmem [resolvable:$true] %s198
          %201 = dma.hbm_to_vmem [thread:$0]  %s196, 32, %s199, %s187
        $region24: #{tpu_custom_call.1} parent=15 // pred_fallthru
          _
      $region16: #{tpu_custom_call.1} parent=5 // pred_fallthru
        _
      %p202 = scmp.le.s32.totalorder 1, %s22
      %p203 = scmp.lt.s32.totalorder %s22, 3
      %p204 = pnand %p202, %p203
      %p205 = pneg %p204
      // Predicated region
      $region25: #{tpu_custom_call.1} parent=5 // pred_check
        _
      $region26: #{tpu_custom_call.1} parent=5 // pred_check_branch
        %207 = sbr.rel (%p204) target = $region28
      $region27: #{tpu_custom_call.1} parent=5 // pred_region
        %s208 = ssub.s32 %s22, 1
        %s209 = sand.u32 %s49, 1
        %s210 = scalar_lea.sflag [#allocation3], %s209
        %s211 = sand.u32 %s49, 1
        %s212 = smul.addr %s211, 8
        %s213 = scalar_lea.vmem [#allocation2], %s212
        // Predicated region
        $region29: #{tpu_custom_call.1} parent=27 // pred_check
          %p214 = pneg %p62
        $region30: #{tpu_custom_call.1} parent=27 // pred_check_branch
          %216 = sbr.rel (%p214) target = $region32
        $region31: #{tpu_custom_call.1} parent=27 // pred_region
          %217 = dma.done %s210, 128
        $region32: #{tpu_custom_call.1} parent=27 // pred_fallthru
          _
        %s218 = sand.u32 %s77, 1
        %s219 = scalar_lea.sflag [#allocation6], %s218
        %s220 = sand.u32 %s77, 1
        %s221 = smul.addr %s220, 2
        %s222 = scalar_lea.vmem [#allocation5], %s221
        // Predicated region
        $region33: #{tpu_custom_call.1} parent=27 // pred_check
          %p223 = pneg %p90
        $region34: #{tpu_custom_call.1} parent=27 // pred_check_branch
          %225 = sbr.rel (%p223) target = $region36
        $region35: #{tpu_custom_call.1} parent=27 // pred_region
          %226 = dma.done %s219, 32
        $region36: #{tpu_custom_call.1} parent=27 // pred_fallthru
          _
        %s227 = sand.u32 %s49, 1
        %s228 = scalar_lea.sflag [#allocation3], %s227
        %s229 = sand.u32 %s49, 1
        %s230 = smul.addr %s229, 8
        %s231 = scalar_lea.vmem [#allocation2], %s230
        %p232 = pneg %p62
        %p233 = pneg %p59
        %s234 = sand.u32 %s77, 1
        %s235 = scalar_lea.sflag [#allocation6], %s234
        %s236 = sand.u32 %s77, 1
        %s237 = smul.addr %s236, 2
        %s238 = scalar_lea.vmem [#allocation5], %s237
        %p239 = pneg %p90
        %p240 = pneg %p87
        %p241 = pneg %p116
        %p242 = pneg %p113
        %s243 = sand.u32 %s103, 1
        %s244 = scalar_lea.sflag [#allocation4], %s243
        %s245 = sand.u32 %s103, 1
        %s246 = smul.addr %s245, 8
        %s247 = scalar_lea.vmem [#allocation7], %s246
        %p248 = pneg %p142
        %p249 = pneg %p139
        %s250 = sand.u32 %s129, 1
        %s251 = scalar_lea.sflag [#allocation9], %s250
        %s252 = sand.u32 %s129, 1
        %s253 = smul.addr %s252, 8
        %s254 = scalar_lea.vmem [#allocation8], %s253
        %p255 = scmp.eq.s32.totalorder %s32, 0
        // Predicated region
        $region37: #{tpu_custom_call.1} parent=27 // pred_check
          %p256 = pneg %p255
        $region38: #{tpu_custom_call.1} parent=27 // pred_check_branch
          %258 = sbr.rel (%p256) target = $region40
        $region39: #{tpu_custom_call.1} parent=27 // pred_region
          %259 = vst [vmem:[%s247] sm:$0x3] 0.0
          %260 = vst [vmem:[%s247 + $0x2] sm:$0x3] 0.0
          %261 = vst [vmem:[%s247 + $0x4] sm:$0x3] 0.0
          %262 = vst [vmem:[%s247 + $0x6] sm:$0x3] 0.0
          %263 = vst [vmem:[%s254] sm:$0x3] 0.0
          %264 = vst [vmem:[%s254 + $0x2] sm:$0x3] 0.0
          %265 = vst [vmem:[%s254 + $0x4] sm:$0x3] 0.0
          %266 = vst [vmem:[%s254 + $0x6] sm:$0x3] 0.0
        $region40: #{tpu_custom_call.1} parent=27 // pred_fallthru
          _
        %v267 = vld [vmem:[%s222] sm:$0x3]
        %v268 = vld [vmem:[%s213] sm:$0x3]
        %s269 = scalar_lea.vmem %s213, 2 [#allocation2]
        %v270 = vld [vmem:[%s269] sm:$0x3]
        %v271 = vmax.f32 %v268, %v270
        %s272 = scalar_lea.vmem %s213, 4 [#allocation2]
        %v273 = vld [vmem:[%s272] sm:$0x3]
        %v274 = vmax.f32 %v271, %v273
        %s275 = scalar_lea.vmem %s213, 6 [#allocation2]
        %v276 = vld [vmem:[%s275] sm:$0x3]
        %v277 = vmax.f32 %v274, %v276
        %v278 = vsub.f32 %v268, %v277
        %v279 = vmul.f32 %v278, 1.442695
        %v280 = vpow.pop %v279
        %v281 = vsub.f32 %v270, %v277
        %v282 = vmul.f32 %v281, 1.442695
        %v283 = vpow.pop %v282
        %v284 = vadd.f32 %v280, %v283
        %v285 = vsub.f32 %v273, %v277
        %v286 = vmul.f32 %v285, 1.442695
        %v287 = vpow.pop %v286
        %v288 = vadd.f32 %v284, %v287
        %v289 = vsub.f32 %v276, %v277
        %v290 = vmul.f32 %v289, 1.442695
        %v291 = vpow.pop %v290
        %v292 = vadd.f32 %v288, %v291
        %v293 = vrcp.pop %v292
        %v294 = vmul.f32 %v292, %v293
        %v295 = vsub.f32 2.0, %v294
        %v296 = vmul.f32 %v293, %v295
        %v297 = vmul.f32 %v280, %v296
        %vm298 = vcmp.eq.s32.totalorder %v267, 0
        %v299 = vsel %vm298, 1, 0
        %v300 = vcvt.s32.f32 %v299
        %v301 = vld [vmem:[%s247] sm:$0x3]
        %v302 = vmul.f32 %v297, %v300
        %v303 = vadd.f32 %v301, %v302
        %304 = vst [vmem:[%s247] sm:$0x3] %v303
        %v305 = vld [vmem:[%s254] sm:$0x3]
        %v306 = vadd.f32 %v297, %v300
        %v307 = vadd.f32 %v305, %v306
        %308 = vst [vmem:[%s254] sm:$0x3] %v307
        %v309 = vmul.f32 %v283, %v296
        %vm310 = vcmp.eq.s32.totalorder %v267, 1
        %v311 = vsel %vm310, 1, 0
        %v312 = vcvt.s32.f32 %v311
        %s313 = scalar_lea.vmem %s247, 2 [#allocation7]
        %v314 = vld [vmem:[%s313] sm:$0x3]
        %v315 = vmul.f32 %v309, %v312
        %v316 = vadd.f32 %v314, %v315
        %317 = vst [vmem:[%s313] sm:$0x3] %v316
        %s318 = scalar_lea.vmem %s254, 2 [#allocation8]
        %v319 = vld [vmem:[%s318] sm:$0x3]
        %v320 = vadd.f32 %v309, %v312
        %v321 = vadd.f32 %v319, %v320
        %322 = vst [vmem:[%s318] sm:$0x3] %v321
        %v323 = vmul.f32 %v287, %v296
        %vm324 = vcmp.eq.s32.totalorder %v267, 2
        %v325 = vsel %vm324, 1, 0
        %v326 = vcvt.s32.f32 %v325
        %s327 = scalar_lea.vmem %s247, 4 [#allocation7]
        %v328 = vld [vmem:[%s327] sm:$0x3]
        %v329 = vmul.f32 %v323, %v326
        %v330 = vadd.f32 %v328, %v329
        %331 = vst [vmem:[%s327] sm:$0x3] %v330
        %s332 = scalar_lea.vmem %s254, 4 [#allocation8]
        %v333 = vld [vmem:[%s332] sm:$0x3]
        %v334 = vadd.f32 %v323, %v326
        %v335 = vadd.f32 %v333, %v334
        %336 = vst [vmem:[%s332] sm:$0x3] %v335
        %v337 = vmul.f32 %v291, %v296
        %vm338 = vcmp.eq.s32.totalorder %v267, 3
        %v339 = vsel %vm338, 1, 0
        %v340 = vcvt.s32.f32 %v339
        %s341 = scalar_lea.vmem %s247, 6 [#allocation7]
        %v342 = vld [vmem:[%s341] sm:$0x3]
        %v343 = vmul.f32 %v337, %v340
        %v344 = vadd.f32 %v342, %v343
        %345 = vst [vmem:[%s341] sm:$0x3] %v344
        %s346 = scalar_lea.vmem %s254, 6 [#allocation8]
        %v347 = vld [vmem:[%s346] sm:$0x3]
        %v348 = vadd.f32 %v337, %v340
        %v349 = vadd.f32 %v347, %v348
        %350 = vst [vmem:[%s346] sm:$0x3] %v349
        %s351 = sand.u32 %s103, 1
        %s352 = scalar_lea.sflag [#allocation4], %s351
        %s353 = sand.u32 %s103, 1
        %s354 = smul.addr %s353, 8
        %s355 = scalar_lea.vmem [#allocation7], %s354
        %s356 = sand.u32 %s129, 1
        %s357 = scalar_lea.sflag [#allocation9], %s356
        %s358 = sand.u32 %s129, 1
        %s359 = smul.addr %s358, 8
        %s360 = scalar_lea.vmem [#allocation8], %s359
        // Predicated region
        $region41: #{tpu_custom_call.1} parent=27 // pred_check
          %p361 = pneg %p113
        $region42: #{tpu_custom_call.1} parent=27 // pred_check_branch
          %363 = sbr.rel (%p361) target = $region44
        $region43: #{tpu_custom_call.1} parent=27 // pred_region
          %s365 = ssub.s32 128, 128
          %366 = vsyncadd %s352, %s365
          %s367 = smul.addr %s31, 4
          %s368 = smul.addr %s367, 32
          %s369 = scalar_lea.hbm %s2, %s368
          %s370 = sshll.u32 %s355, 4
          %s371 = int_to_ptr.vmem [resolvable:$true] %s370
          %376 = dma.vmem_to_hbm [thread:$0]  %s371, 128, %s369, %s352, 32, 32, 2
        $region44: #{tpu_custom_call.1} parent=27 // pred_fallthru
          _
        // Predicated region
        $region45: #{tpu_custom_call.1} parent=27 // pred_check
          %p377 = pneg %p139
        $region46: #{tpu_custom_call.1} parent=27 // pred_check_branch
          %379 = sbr.rel (%p377) target = $region48
        $region47: #{tpu_custom_call.1} parent=27 // pred_region
          %s381 = ssub.s32 128, 128
          %382 = vsyncadd %s357, %s381
          %s383 = smul.addr %s31, 4
          %s384 = smul.addr %s383, 32
          %s385 = scalar_lea.hbm %s3, %s384
          %s386 = sshll.u32 %s360, 4
          %s387 = int_to_ptr.vmem [resolvable:$true] %s386
          %392 = dma.vmem_to_hbm [thread:$0]  %s387, 128, %s385, %s357, 32, 32, 2
        $region48: #{tpu_custom_call.1} parent=27 // pred_fallthru
          _
      $region28: #{tpu_custom_call.1} parent=5 // pred_fallthru
        _
      %p393 = scmp.le.s32.totalorder 2, %s22
      // Predicated region
      $region49: #{tpu_custom_call.1} parent=5 // pred_check
        %p394 = pneg %p393
      $region50: #{tpu_custom_call.1} parent=5 // pred_check_branch
        %396 = sbr.rel (%p394) target = $region52
      $region51: #{tpu_custom_call.1} parent=5 // pred_region
        %s397 = ssub.s32 %s22, 2
        // Predicated region
        $region53: #{tpu_custom_call.1} parent=51 // pred_check
          %p398 = pneg %p119
        $region54: #{tpu_custom_call.1} parent=51 // pred_check_branch
          %400 = sbr.rel (%p398) target = $region56
        $region55: #{tpu_custom_call.1} parent=51 // pred_region
          %s401 = sand.u32 %s104, 1
          %s402 = scalar_lea.sflag [#allocation4], %s401
          %s403 = sand.u32 %s104, 1
          %s404 = smul.addr %s403, 8
          %s405 = scalar_lea.vmem [#allocation7], %s404
          %406 = dma.done %s402, 128
        $region56: #{tpu_custom_call.1} parent=51 // pred_fallthru
          _
        // Predicated region
        $region57: #{tpu_custom_call.1} parent=51 // pred_check
          %p407 = pneg %p145
        $region58: #{tpu_custom_call.1} parent=51 // pred_check_branch
          %409 = sbr.rel (%p407) target = $region60
        $region59: #{tpu_custom_call.1} parent=51 // pred_region
          %s410 = sand.u32 %s130, 1
          %s411 = scalar_lea.sflag [#allocation9], %s410
          %s412 = sand.u32 %s130, 1
          %s413 = smul.addr %s412, 8
          %s414 = scalar_lea.vmem [#allocation8], %s413
          %415 = dma.done %s411, 128
        $region60: #{tpu_custom_call.1} parent=51 // pred_fallthru
          _
      $region52: #{tpu_custom_call.1} parent=5 // pred_fallthru
        _
    $region6: #{tpu_custom_call.1} parent=1 // loop_footer
      %s26 = sadd.s32 1, %s22
    $region7: #{tpu_custom_call.1} parent=1 // loop_footer_branch
      %21 = sbr.rel target = $region3
    $region8: #{tpu_custom_call.1} parent=1 // loop_exit
      _
    %416 = vsyncpa [#allocation3], 1
    %s417 = scalar_lea.sflag [#allocation3], 1
    %418 = vsyncpa %s417, 1
    %419 = vsyncpa [#allocation6], 1
    %s420 = scalar_lea.sflag [#allocation6], 1
    %421 = vsyncpa %s420, 1
    %422 = vsyncpa [#allocation4], 1
    %s423 = scalar_lea.sflag [#allocation4], 1
    %424 = vsyncpa %s423, 1
    %425 = vsyncpa [#allocation9], 1
    %s426 = scalar_lea.sflag [#allocation9], 1
    %427 = vsyncpa %s426, 1

</llo_original>
